<compile_context>
chip_gen: v6e
topology: v6e:2x2x1
jax: 0.10.0
libtpu: 0.0.40
codegen_flags: <defaults>
</compile_context>

<pallas_src>
import jax
import jax.numpy as jnp
from jax.experimental import pallas as pl
from jax.experimental.pallas import tpu as pltpu

EPS = 1e-6

# Double-buffered input + in-kernel f32 temps budget; safe under v7x's 64 MiB
# physical VMEM and the explicit 48 MiB scoped limit requested below.
_VMEM_BUDGET_BYTES = 36 * 1024 * 1024
_VMEM_LIMIT_BYTES = 48 * 1024 * 1024
_MAX_TM = 8192


def _round_up(a, b):
    return (a + b - 1) // b * b


def _choose_pack(nc, hw):
    """Number of consecutive channels packed per kernel row (lane utilization)."""
    if hw % 128 == 0 or hw >= 512:
        return 1
    best_g, best_util = 1, hw / _round_up(hw, 128)
    for g in range(2, 33):
        if nc % g:
            continue
        ghw = g * hw
        if ghw > 4096:
            break
        util = ghw / _round_up(ghw, 128)
        if util > best_util + 1e-9:
            best_g, best_util = g, util
    return best_g


def _pick_tm(rows, row_width, elem_bytes):
    """Largest row tile whose true VMEM footprint fits the budget.

    Counts the double-buffered input rows at their real dtype width (lane-padded
    to 128) plus ~2 f32 in-kernel intermediates (the f32 upcast and x**p).
    """
    lanes = _round_up(row_width, 128)
    per_row = 2 * lanes * elem_bytes + 2 * lanes * 4
    tm = _VMEM_BUDGET_BYTES // per_row
    tm = min(tm, _MAX_TM)
    # Keep >= 2 grid steps so the "parallel" grid axis can feed both v7x TCs.
    if rows > 8:
        tm = min(tm, _round_up(pl.cdiv(rows, 2), 8))
    tm = max(8, (tm // 8) * 8)
    # TODO(synk): for H*W of several hundred thousand (even TM=8 overflows),
    # add a 2-D grid path (row tiles x HW chunks, HW axis "arbitrary") with a
    # partial-sum VMEM scratch and pl.when init/finalize.
    if rows <= tm:
        return rows  # full-extent block on the sublane axis (always legal)
    return tm


def _ipow(x, n):
    """x**n for static positive int n via square-and-multiply (VPU only)."""
    acc, base = None, x
    while n:
        if n & 1:
            acc = base if acc is None else acc * base
        n >>= 1
        if n:
            base = base * base
    return acc


def _make_kernel(G, HW, TM, static_p):
    inv_hw = 1.0 / HW

    def compute(p_val, x_ref, o_ref):
        x = x_ref[...].astype(jnp.float32)      # f32 math even for bf16 inputs
        x = jnp.maximum(x, EPS)                 # clamp(min=eps); keeps log safe
        if static_p is None:
            # Runtime learnable p: x**p = exp(p*log(x))  (EUP path).
            # TODO(synk): on v6e/v7x the per-element log/exp could run in bf16
            # (~2x EUP rate) with the mean kept in f32, at reduced tolerance.
            xp = jnp.exp(p_val * jnp.log(x))
        else:
            xp = _ipow(x, static_p)             # repeated VPU multiplies
        if G == 1:
            sums = jnp.sum(xp, axis=-1, keepdims=True)            # (TM, 1)
        else:
            # Segmented (per packed channel) sum on the MXU: xp @ one-hot mask.
            ghw = G * HW
            col = jax.lax.broadcasted_iota(jnp.int32, (ghw, G), 0)
            seg = jax.lax.broadcasted_iota(jnp.int32, (ghw, G), 1)
            sel = (col // HW == seg).astype(jnp.float32)
            sums = jnp.dot(xp, sel, preferred_element_type=jnp.float32)  # (TM, G)
        m = sums * inv_hw                                          # mean over H*W
        # Final m**(1/p): only TM*G elements -> transcendental cost negligible.
        inv_p = (1.0 / p_val) if static_p is None else (1.0 / float(static_p))
        out = jnp.exp(inv_p * jnp.log(m))
        # Lane-dense store: one (1, 1, TM*G) row per grid step (no masked
        # 1-lane vst.msk writebacks).
        o_ref[...] = out.reshape(1, 1, TM * G).astype(o_ref.dtype)

    if static_p is None:
        def kernel(p_ref, x_ref, o_ref):
            compute(p_ref[0], x_ref, o_ref)
    else:
        def kernel(x_ref, o_ref):
            compute(None, x_ref, o_ref)
    return kernel


def gem_pallas(x, p, *, static_p=None):
    """GeM pooling.  x: (N, C, H, W); p: shape-(1,) learnable scalar array.

    If `static_p` is a positive Python int matching the (frozen) value of p,
    the kernel specializes the per-element pow to VPU multiplies instead of
    the exp/log EUP path (biggest single lever on v7x).
    """
    N, C, H, W = x.shape
    NC, HW = N * C, H * W

    G = _choose_pack(NC, HW)
    rows = NC // G
    row_width = G * HW
    x2d = x.reshape(rows, row_width)

    elem_bytes = jnp.dtype(x.dtype).itemsize
    TM = _pick_tm(rows, row_width, elem_bytes)
    num_tiles = pl.cdiv(rows, TM)

    kernel = _make_kernel(G, HW, TM, static_p)

    out_shape = jax.ShapeDtypeStruct((num_tiles, 1, TM * G), x.dtype)
    n_transcendental = (2 * NC * HW + 2 * NC) if static_p is None else (2 * NC)
    cost = pl.CostEstimate(
        flops=6 * NC * HW,
        transcendentals=n_transcendental,
        bytes_accessed=NC * HW * elem_bytes + NC * elem_bytes,
    )
    compiler_params = pltpu.CompilerParams(
        dimension_semantics=("parallel",),       # shard row tiles across TCs
        vmem_limit_bytes=_VMEM_LIMIT_BYTES,
    )

    if static_p is None:
        p_arg = jnp.asarray(p, dtype=jnp.float32).reshape(1)
        grid_spec = pltpu.PrefetchScalarGridSpec(
            num_scalar_prefetch=1,               # p -> SMEM
            grid=(num_tiles,),
            in_specs=[pl.BlockSpec((TM, row_width), lambda i, p_ref: (i, 0))],
            out_specs=pl.BlockSpec((1, 1, TM * G), lambda i, p_ref: (i, 0, 0)),
        )
        out3d = pl.pallas_call(
            kernel, out_shape=out_shape, grid_spec=grid_spec,
            compiler_params=compiler_params, cost_estimate=cost,
        )(p_arg, x2d)
    else:
        assert isinstance(static_p, int) and static_p >= 1
        grid_spec = pltpu.PrefetchScalarGridSpec(
            num_scalar_prefetch=0,
            grid=(num_tiles,),
            in_specs=[pl.BlockSpec((TM, row_width), lambda i: (i, 0))],
            out_specs=pl.BlockSpec((1, 1, TM * G), lambda i: (i, 0, 0)),
        )
        out3d = pl.pallas_call(
            kernel, out_shape=out_shape, grid_spec=grid_spec,
            compiler_params=compiler_params, cost_estimate=cost,
        )(x2d)

    # Tail columns of the last row are padding computed from stale VMEM
    # (benign, never mixed into valid rows' means); slice them off here.
    return out3d.reshape(num_tiles * TM * G)[:NC].reshape(N, C, 1, 1)


def gem_reference(x, p):
    # Pure-JAX reference mirroring the PyTorch gem()
    xp = jnp.power(jnp.maximum(x, EPS), p[0])
    m = jnp.mean(xp, axis=(-2, -1), keepdims=True)
    return jnp.power(m, 1.0 / p[0])


if __name__ == "__main__":
    key = jax.random.PRNGKey(0)
    N, C, H, W = 2, 4, 16, 16
    x = jax.random.uniform(key, (N, C, H, W), dtype=jnp.float32)

    # Parameter init matches GeM.__init__: p = torch.ones(1) * 3
    p = jnp.ones((1,), dtype=jnp.float32) * 3.0

    # 1) Runtime learnable-p path (faithful to the module: p is a Parameter).
    out = gem_pallas(x, p)
    jax.block_until_ready(out)
    ref = gem_reference(x, p)
    assert out.shape == (N, C, 1, 1), out.shape
    assert jnp.allclose(out, ref, atol=1e-5, rtol=1e-5), (
        float(jnp.max(jnp.abs(out - ref)))
    )

    # 2) Static-p fast path (VPU multiplies instead of per-element exp/log).
    out_s = gem_pallas(x, p, static_p=3)
    jax.block_until_ready(out_s)
    assert jnp.allclose(out_s, ref, atol=1e-5, rtol=1e-5), (
        float(jnp.max(jnp.abs(out_s - ref)))
    )

    # 3) Non-lane-aligned spatial extent (7x7=49) exercises channel packing.
    x_small = jax.random.uniform(jax.random.PRNGKey(1), (2, 4, 7, 7),
                                 dtype=jnp.float32)
    out2 = gem_pallas(x_small, p)
    jax.block_until_ready(out2)
    ref2 = gem_reference(x_small, p)
    assert out2.shape == (2, 4, 1, 1), out2.shape
    assert jnp.allclose(out2, ref2, atol=1e-5, rtol=1e-5), (
        float(jnp.max(jnp.abs(out2 - ref2)))
    )

    print("KERNEL_OK")
</pallas_src>

<mosaic_0001>
module attributes {stable_mosaic.version = 11 : i64} {
  func.func @kernel(%arg0: i32, %arg1: memref<1xf32, #tpu.memory_space<smem>>, %arg2: memref<8x256xf32, #tpu.memory_space<vmem>>, %arg3: memref<1x1x8xf32, #tpu.memory_space<vmem>>) attributes {dimension_semantics = [#tpu.dimension_semantics<parallel>], iteration_bounds = array<i64: 1>, scalar_prefetch = 1 : i64, scratch_operands = 0 : i64, tpu.core_type = #tpu.core_type<tc>, window_params = [{transform_indices = @transform_0, window_bounds = array<i64: 8, 256>}, {transform_indices = @transform_1, window_bounds = array<i64: 1, 1, 8>}]} {
    %c0 = arith.constant 0 : index
    %0 = memref.load %arg1[%c0] : memref<1xf32, #tpu.memory_space<smem>>
    %c0_0 = arith.constant 0 : index
    %c0_1 = arith.constant 0 : index
    %1 = vector.load %arg2[%c0_0, %c0_1] : memref<8x256xf32, #tpu.memory_space<vmem>>, vector<8x256xf32>
    %cst = arith.constant 9.99999997E-7 : f32
    %2 = vector.broadcast %cst : f32 to vector<8x256xf32>
    %3 = arith.maximumf %1, %2 : vector<8x256xf32>
    %4 = math.log %3 : vector<8x256xf32>
    %5 = vector.broadcast %0 : f32 to vector<8x256xf32>
    %6 = arith.mulf %5, %4 : vector<8x256xf32>
    %7 = math.exp %6 : vector<8x256xf32>
    %cst_2 = arith.constant dense<0.000000e+00> : vector<8xf32>
    %8 = vector.multi_reduction <add>, %7, %cst_2 [1] : vector<8x256xf32> to vector<8xf32>
    %9 = vector.shape_cast %8 : vector<8xf32> to vector<8x1xf32>
    %cst_3 = arith.constant 3.906250e-03 : f32
    %10 = vector.broadcast %cst_3 : f32 to vector<8x1xf32>
    %11 = arith.mulf %9, %10 : vector<8x1xf32>
    %cst_4 = arith.constant 1.000000e+00 : f32
    %12 = arith.divf %cst_4, %0 : f32
    %13 = math.log %11 : vector<8x1xf32>
    %14 = vector.broadcast %12 : f32 to vector<8x1xf32>
    %15 = arith.mulf %14, %13 : vector<8x1xf32>
    %16 = math.exp %15 : vector<8x1xf32>
    %17 = vector.shape_cast %16 : vector<8x1xf32> to vector<1x1x8xf32>
    %c0_5 = arith.constant 0 : index
    %c0_6 = arith.constant 0 : index
    %c0_7 = arith.constant 0 : index
    %18 = vector.load %arg3[%c0_5, %c0_6, %c0_7] : memref<1x1x8xf32, #tpu.memory_space<vmem>>, vector<1x1x8xf32>
    tpu.vector_store %arg3[%c0_5, %c0_6, %c0_7], %17 {strides = array<i32>} : memref<1x1x8xf32, #tpu.memory_space<vmem>>, vector<1x1x8xf32>,
    return
  }
  func.func @transform_0(%arg0: i32, %arg1: memref<1xf32, #tpu.memory_space<smem>>) -> (i32, i32) {
    %c0_i32 = arith.constant 0 : i32
    %c0_i32_0 = arith.constant 0 : i32
    return %arg0, %c0_i32 : i32, i32
  }
  func.func @transform_1(%arg0: i32, %arg1: memref<1xf32, #tpu.memory_space<smem>>) -> (i32, i32, i32) {
    %c0_i32 = arith.constant 0 : i32
    %c0_i32_0 = arith.constant 0 : i32
    %c0_i32_1 = arith.constant 0 : i32
    return %arg0, %c0_i32, %c0_i32_0 : i32, i32, i32
  }
}

</mosaic_0001>

<llo_original>
// kernel: tpu_custom_call.1
$region0: #{tpu_custom_call.1}
  #allocation0 [shape = 'u32[]', space=smem, size = 0x4, offset = 0x4, fixed_abs, tag = 'smem constant byte address 0x4 - core index']
  #allocation1 [shape = 'u32[144,128]{1,0:T(1,128)}', space=vmem, size = 0x12000, scoped, tag = 'internal scratch']
  #allocation2 [shape = 's32[1]{0}', space=sflag, size = 0x4, scoped, tag = 'scoped memory for tpu_custom_call.1']
  #allocation3 [shape = 'f32[1]{0:T(128)S(6)}', space=smem, size = 0x200, scoped, tag = 'prefetched SMEM operand 0']
  %s0 = inlined_call_operand.<no memory space> [shape: f32[1], index: 0, kind: input, shape index: {}]
  %s1 = inlined_call_operand.hbm [shape: f32[8,256], index: 1, kind: input, shape index: {}]
  %s2 = inlined_call_operand.hbm [shape: f32[1,1,8], index: 2, kind: output, shape index: {}]
  %s3 = sld [smem:[#allocation0]]
  $region18: #{tpu_custom_call.1} parent=0
    _
  %s5 = ssub.s32 1, %s3
  %s6 = scalar_select 0, %s5, %s3
  %7 = sst [smem:[#allocation3]] %s0
  $region1: #{tpu_custom_call.1} parent=0
    #allocation4 [shape = 'u8[8192]{0}', space=vmem, size = 0x2000, scoped, tag = 'input window, operand 1, single buffered']
    #allocation5 [shape = 's32[1]{0}', space=sflag, size = 0x4, scoped, tag = 'scoped memory for tpu_custom_call.1']
    #allocation6 [shape = 's32[1]{0}', space=sflag, size = 0x4, scoped, tag = 'scoped memory for tpu_custom_call.1']
    #allocation7 [shape = 'u8[512]{0}', space=vmem, size = 0x400, scoped, tag = 'output window, operand 0, single buffered']
    %8 = vsyncpa [#allocation5], 0
    %9 = vsyncpa [#allocation6], 0
    // Predicated region
    $region2: #{tpu_custom_call.1} parent=1 // pred_check
      _
    $region3: #{tpu_custom_call.1} parent=1 // pred_check_branch
      %11 = sbr.rel (0) target = $region5
    $region4: #{tpu_custom_call.1} parent=1 // pred_region
      %s13 = ssub.s32 256, 256
      %14 = vsyncadd [#allocation5], %s13
      %s16 = sshll.u32 [#allocation4], 4
      %s17 = int_to_ptr.vmem [resolvable:$true] %s16
      %19 = dma.hbm_to_vmem [thread:$0]  %s1, 256, %s17, [#allocation5]
    $region5: #{tpu_custom_call.1} parent=1 // pred_fallthru
      _
    // Predicated region
    $region6: #{tpu_custom_call.1} parent=1 // pred_check
      _
    $region7: #{tpu_custom_call.1} parent=1 // pred_check_branch
      %21 = sbr.rel (0) target = $region9
    $region8: #{tpu_custom_call.1} parent=1 // pred_region
      %22 = dma.done [#allocation5], 256
    $region9: #{tpu_custom_call.1} parent=1 // pred_fallthru
      _
    %s23 = sld [smem:[#allocation3]]
    %v24 = vld [vmem:[#allocation4] sm:$0xff]
    %v25 = vld [vmem:[#allocation4 + $0x8] sm:$0xff]
    %v26 = vmax.f32 %v24, 1e-06
    %v27 = vmax.f32 %v25, 1e-06
    %v28 = vlog2.pop %v26
    %v29 = vmul.f32 %v28, 0.6931472
    %v30 = vlog2.pop %v27
    %v31 = vmul.f32 %v30, 0.6931472
    %v32 = vstv %s23
    %v33 = vmul.f32 %v32, %v29
    %v34 = vmul.f32 %v32, %v31
    %v35 = vmul.f32 %v33, 1.442695
    %v36 = vpow.pop %v35
    %v37 = vmul.f32 %v34, 1.442695
    %v38 = vpow.pop %v37
    %v39 = vadd.f32 %v36, %v38
    %40 = vadd.xlane.f32.xlu0 %v39
    %v41 = vpop.xlane.xlu0 %40
    %v42 = vmul.f32 %v41, 0.00390625
    %v43 = vstv %s23
    %v44 = vrcp.pop %v43
    %s45 = vtos %v44
    %v46 = vlog2.pop %v42
    %v47 = vmul.f32 %v46, 0.6931472
    %v48 = vstv %s45
    %v49 = vmul.f32 %v48, %v47
    %v50 = vmul.f32 %v49, 1.442695
    %v51 = vpow.pop %v50
    %v53 = vlaneseq
    %v54 = vand.u32 %v53, 127
    %v55 = vlaneseq
    %v56 = vshrl.u32 %v55, 7
    %v57 = vsub.s32 %v54, %v56
    %v58 = vrot.slane %v51, %v57
    %vm60 = vcmask 57344
    %61 = vst.msk [vmem:[#allocation7] sm:$0x1] %vm60, %v58
    // Predicated region
    $region10: #{tpu_custom_call.1} parent=1 // pred_check
      _
    $region11: #{tpu_custom_call.1} parent=1 // pred_check_branch
      %63 = sbr.rel (0) target = $region13
    $region12: #{tpu_custom_call.1} parent=1 // pred_region
      %s65 = ssub.s32 16, 16
      %66 = vsyncadd [#allocation6], %s65
      %s68 = sshll.u32 [#allocation7], 4
      %s69 = int_to_ptr.vmem [resolvable:$true] %s68
      %71 = dma.vmem_to_hbm [thread:$0]  %s69, 16, %s2, [#allocation6]
    $region13: #{tpu_custom_call.1} parent=1 // pred_fallthru
      _
    // Predicated region
    $region14: #{tpu_custom_call.1} parent=1 // pred_check
      _
    $region15: #{tpu_custom_call.1} parent=1 // pred_check_branch
      %73 = sbr.rel (0) target = $region17
    $region16: #{tpu_custom_call.1} parent=1 // pred_region
      %74 = dma.done [#allocation6], 16
    $region17: #{tpu_custom_call.1} parent=1 // pred_fallthru
      _
    %75 = vsyncpa [#allocation5], 1
    %76 = vsyncpa [#allocation6], 1

</llo_original>
